<compile_context>
chip_gen: v5e
topology: v5e:2x2
jax: 0.10.0
libtpu: 0.0.40
codegen_flags: <defaults>
</compile_context>

<pallas_src>
import functools

import jax
import jax.numpy as jnp
from jax import lax
from jax.experimental import pallas as pl
from jax.experimental.pallas import tpu as pltpu


_IDX_BITS = 12                       # low bits of a packed key hold the tile-local lane
_IDX_MASK = (1 << _IDX_BITS) - 1


# ---------------------------------------------------------------------------
# Fused MLP-chain kernel (GAP done in the wrapper; matmuls run bf16 on the MXU)
# ---------------------------------------------------------------------------
def _mlp_chain_kernel(*refs, acts, epilogue):
    n_layers = len(acts)
    x_ref = refs[0]
    o_ref = refs[1 + 2 * n_layers]
    h = x_ref[...]                                        # bf16
    for l in range(n_layers):
        w = refs[1 + 2 * l][...]                          # bf16
        bvec = refs[2 + 2 * l][...]                       # f32 (1, dout)
        h = jnp.dot(h, w, preferred_element_type=jnp.float32) + bvec
        if acts[l] == "relu":
            h = jnp.maximum(h, 0.0)
        if l + 1 < n_layers:
            h = h.astype(jnp.bfloat16)                    # keep the next matmul on the bf16 MXU path
    if epilogue == "l2":
        nrm2 = jnp.sum(h * h, axis=1, keepdims=True)
        h = h * lax.rsqrt(jnp.maximum(nrm2, 1e-24))       # EUP rsqrt
    elif epilogue == "softmax":
        z = h - jnp.max(h, axis=1, keepdims=True)
        e = jnp.exp(z)
        h = e * pl.reciprocal(jnp.sum(e, axis=1, keepdims=True), approx=True)
    o_ref[...] = h.astype(o_ref.dtype)


def mlp_chain_pallas(x, layers, *, epilogue=None):
    """y = epilogue(Ln(...act(L1(x))...)) — all layers fused in one pallas_call."""
    n = x.shape[0]
    acts = tuple(act for (_, _, act) in layers)
    dout = layers[-1][0].shape[1]
    args = [x.astype(jnp.bfloat16)]
    in_specs = [pl.BlockSpec(args[0].shape, lambda i: (0, 0))]
    for (w, bvec, _) in layers:
        wb = w.astype(jnp.bfloat16)
        b2 = bvec.reshape(1, -1).astype(jnp.float32)
        args += [wb, b2]
        in_specs += [pl.BlockSpec(wb.shape, lambda i: (0, 0)),
                     pl.BlockSpec(b2.shape, lambda i: (0, 0))]
    return pl.pallas_call(
        functools.partial(_mlp_chain_kernel, acts=acts, epilogue=epilogue),
        out_shape=jax.ShapeDtypeStruct((n, dout), jnp.float32),
        grid=(1,),
        in_specs=in_specs,
        out_specs=pl.BlockSpec((n, dout), lambda i: (0, 0)),
    )(*args)


# ---------------------------------------------------------------------------
# CMSF hot path: bank-streaming distances + tile-local top-k (keys only)
# ---------------------------------------------------------------------------
def _cmsf_topk_kernel(k_ref, mt_ref, lx_ref, lm_ref, o_ref, *, topk, topk_lbl, with_msf):
    b = k_ref.shape[0]
    tile_m = mt_ref.shape[1]
    key_strip = jnp.int32(~_IDX_MASK)
    pop_key = jnp.int32(2147483647)

    # One bf16 MXU matmul per bank tile -> target/bank distances.
    s = jnp.dot(k_ref[...], mt_ref[...], preferred_element_type=jnp.float32)   # (b, tile_m)
    dk = jnp.maximum(2.0 - 2.0 * s, 0.0)

    iota = lax.broadcasted_iota(jnp.int32, (b, tile_m), 1)        # built once, reused

    # Label mask: all pseudo labels disagree with the bank label -> distance 5.0.
    lm = lm_ref[...]                                              # (1, tile_m)
    msk = lx_ref[:, 0:1] != lm
    for j in range(1, topk_lbl):
        msk = jnp.logical_and(msk, lx_ref[:, j:j + 1] != lm)

    def pack(d):
        # Non-negative f32 -> order-preserving int32 key; low bits hold the lane idx.
        return (pltpu.bitcast(d, jnp.int32) & key_strip) | iota

    def tile_topk(keys):
        cols = []
        for _ in range(topk):
            mn = jnp.min(keys, axis=1, keepdims=True)             # packed value+argmin, 1 reduce
            cols.append(mn)
            keys = jnp.where(iota == (mn & _IDX_MASK), pop_key, keys)
        return cols

    # Masked (loss + purity) candidates, then raw (purity_msf) candidates.
    cols_m = tile_topk(pack(jnp.where(msk, jnp.float32(5.0), dk)))
    cols_u = tile_topk(pack(dk)) if with_msf else []

    # Single lane-dense (b, 128) store per tile: [masked keys | raw keys | 0...].
    lane = lax.broadcasted_iota(jnp.int32, (b, 128), 1)
    out = jnp.zeros((b, 128), jnp.int32)
    for t in range(topk):
        out = jnp.where(lane == t, cols_m[t], out)
    for t in range(len(cols_u)):
        out = jnp.where(lane == topk + t, cols_u[t], out)
    o_ref[...] = out


def cmsf_topk_pallas(K, queue_t, Lx, Lm, *, topk, topk_lbl, tile_m=None, with_msf=True):
    """Per bank tile, returns the packed top-k keys (masked + raw) as (n_tiles, b, 128)."""
    b, d = K.shape
    m = queue_t.shape[1]
    if tile_m is None:
        tile_m = min(m, 1024)                  # vreg-pressure sweet spot (review #2)
    assert tile_m % 128 == 0 and m % tile_m == 0, \
        "bank tile must be a multiple of 128 dividing mem_bank_size"
    assert topk <= tile_m <= (1 << _IDX_BITS)
    assert b % 8 == 0, "batch must be a multiple of 8 for the lane-dense output tiling"
    n_tiles = m // tile_m

    lx = Lx.reshape(b, topk_lbl).astype(jnp.int32)
    lm = Lm.reshape(1, m).astype(jnp.int32)

    out = pl.pallas_call(
        functools.partial(_cmsf_topk_kernel, topk=topk, topk_lbl=topk_lbl,
                          with_msf=with_msf),
        out_shape=jax.ShapeDtypeStruct((n_tiles * b, 128), jnp.int32),
        grid=(n_tiles,),
        in_specs=[
            pl.BlockSpec((b, d), lambda i: (0, 0)),          # K (stays resident)
            pl.BlockSpec((d, tile_m), lambda i: (0, i)),     # pre-transposed bf16 bank tile
            pl.BlockSpec((b, topk_lbl), lambda i: (0, 0)),   # pseudo labels (resident)
            pl.BlockSpec((1, tile_m), lambda i: (0, i)),     # bank labels tile
        ],
        out_specs=pl.BlockSpec((b, 128), lambda i: (i, 0)),  # lane-dense per-tile block
        compiler_params=pltpu.CompilerParams(
            dimension_semantics=("parallel",)),              # independent tiles -> 2nd TC on v7x
    )(K.astype(jnp.bfloat16), queue_t, lx, lm)
    return out.reshape(n_tiles, b, 128), tile_m


def cmsf_loss(query, K, queue, queue_t, Lx, Lm, Lx_gt, Lm_gt, *, topk, topk_lbl,
              tile_m=None, with_msf=True):
    b = K.shape[0]
    cand, tile_m = cmsf_topk_pallas(K, queue_t, Lx, Lm, topk=topk, topk_lbl=topk_lbl,
                                    tile_m=tile_m, with_msf=with_msf)
    n_tiles = cand.shape[0]
    tile_off = (jnp.arange(n_tiles, dtype=jnp.int32) * tile_m)[:, None, None]

    def merge(keys):                                       # (n_tiles, b, topk) packed keys
        gidx = (keys & _IDX_MASK) + tile_off               # global bank indices
        kflat = jnp.transpose(keys, (1, 0, 2)).reshape(b, n_tiles * topk)
        gflat = jnp.transpose(gidx, (1, 0, 2)).reshape(b, n_tiles * topk)
        _, pos = lax.top_k(-kflat, topk)                   # k smallest keys per row
        return jnp.take_along_axis(gflat, pos, axis=1)     # (b, topk)

    iNDk = merge(cand[:, :, :topk])
    # Exact f32 Dq only for the k winners (matches reference gather of Dq at iNDk).
    ndq = 2.0 - 2.0 * jnp.einsum("bd,bkd->bk", query, queue[iNDk])
    pur = (Lx_gt[:, None] == Lm_gt[iNDk]).astype(jnp.float32)
    if with_msf:
        iNDk_msf = merge(cand[:, :, topk:2 * topk])
        pur_msf = (Lx_gt[:, None] == Lm_gt[iNDk_msf]).astype(jnp.float32)
    else:
        pur_msf = jnp.zeros_like(pur)

    L = jnp.mean(ndq)
    purity = 100.0 * jnp.mean(pur)
    purity_msf = 100.0 * jnp.mean(pur_msf)
    return L, purity, purity_msf


# ---------------------------------------------------------------------------
# Model definition (parameters + forward), plain-JAX glue around the kernels
# ---------------------------------------------------------------------------
def l2_normalize(x, axis=1, eps=1e-12):
    nrm = jnp.sqrt(jnp.sum(x * x, axis=axis, keepdims=True))
    return x / jnp.maximum(nrm, eps)


def init_mlp(key, din, dhid, dout, scale=0.05):
    k1, k2 = jax.random.split(key)
    return {
        "w1": scale * jax.random.normal(k1, (din, dhid), jnp.float32),
        "b1": jnp.zeros((dhid,), jnp.float32),
        "w2": scale * jax.random.normal(k2, (dhid, dout), jnp.float32),
        "b2": jnp.zeros((dout,), jnp.float32),
    }
    # TODO(synk): reference get_mlp also has a BatchNorm1d between the layers; omitted.


def init_encoder(key, in_ch, feat_dim, hidden_dim, proj_dim, scale=0.05):
    k1, k2 = jax.random.split(key)
    return {
        # TODO(synk): ResNet trunk stubbed as GAP + Linear + ReLU (synthetic weights).
        "trunk_w": scale * jax.random.normal(k1, (in_ch, feat_dim), jnp.float32),
        "trunk_b": jnp.zeros((feat_dim,), jnp.float32),
        "fc": init_mlp(k2, feat_dim, hidden_dim, proj_dim, scale),
    }


def encoder_layers(p):
    fc = p["fc"]
    return [(p["trunk_w"], p["trunk_b"], "relu"),
            (fc["w1"], fc["b1"], "relu"),
            (fc["w2"], fc["b2"], None)]


def init_pseudo_cmsf(key, *, in_ch, feat_dim, mem_bank_size, ncls):
    hidden_dim = feat_dim * 2
    proj_dim = feat_dim // 4
    kq, kp, kh, kqu = jax.random.split(key, 4)
    enc_q = init_encoder(kq, in_ch, feat_dim, hidden_dim, proj_dim)
    enc_t = jax.tree_util.tree_map(lambda x: x, enc_q)       # param_t.copy_(param_q)
    predict_q = init_mlp(kp, proj_dim, hidden_dim, proj_dim)
    mlp_head = {                                             # mlp_xent == 'linear'
        "w": 0.05 * jax.random.normal(kh, (proj_dim, ncls), jnp.float32),
        "b": jnp.zeros((ncls,), jnp.float32),
    }
    queue = l2_normalize(jax.random.normal(kqu, (mem_bank_size, proj_dim), jnp.float32))
    return {
        "encoder_q": enc_q, "encoder_t": enc_t,
        "predict_q": predict_q, "mlp_head": mlp_head,
        "queue": queue,
        "queue_t": jnp.transpose(queue).astype(jnp.bfloat16),   # kernel-ready copy
        "labels": -jnp.ones((mem_bank_size,), jnp.int32),
        "gt_labels": -jnp.ones((mem_bank_size,), jnp.int32),
        "queue_ptr": jnp.zeros((1,), jnp.int32),
    }


def pseudo_cmsf_forward(state, im_q, im_t, gt_labels, is_unsup, shuffle_key, *,
                        m=0.99, topk=5, topk_lbl=1, bank_tile=None,
                        compute_purity_msf=True):
    # ---- GAP as a cheap reduction (not folded into the first weight) ---------
    xq = jnp.mean(im_q, axis=(2, 3))                          # (n, C)

    # ---- query branch: encoder_q -> predict_q -> L2-norm, one fused kernel ---
    pq = state["predict_q"]
    layers_q = encoder_layers(state["encoder_q"]) + [
        (pq["w1"], pq["b1"], "relu"), (pq["w2"], pq["b2"], None)]
    query = mlp_chain_pallas(xq, layers_q, epilogue="l2")

    # ---- momentum update of the target encoder (functional) ------------------
    enc_t = jax.tree_util.tree_map(lambda t, q: t * m + q * (1.0 - m),
                                   state["encoder_t"], state["encoder_q"])

    # ---- target branch (ShuffleBN permutation kept for parity) ---------------
    bsz = im_t.shape[0]
    shuffle_ids = jax.random.permutation(shuffle_key, bsz)
    reverse_ids = jnp.argsort(shuffle_ids)
    xt = jnp.mean(im_t[shuffle_ids], axis=(2, 3))
    current_target = mlp_chain_pallas(xt, encoder_layers(enc_t), epilogue="l2")
    current_target = current_target[reverse_ids]

    # ---- pseudo labels: mlp_head + softmax fused ------------------------------
    prob = mlp_chain_pallas(
        current_target, [(state["mlp_head"]["w"], state["mlp_head"]["b"], None)],
        epilogue="softmax")
    prob_topk, pred_topk = lax.top_k(prob, 5)
    pseudo_labels_topk = pred_topk.astype(jnp.int32)

    sup_mask = (is_unsup == 0)
    unsup_mask = (is_unsup == 1)
    col0 = jnp.where(sup_mask, gt_labels.astype(jnp.int32), pseudo_labels_topk[:, 0])
    pseudo_labels_topk = pseudo_labels_topk.at[:, 0].set(col0)
    # (use_conf == False, cache_sup == False branch of the reference)

    # ---- dequeue & enqueue (before the NN search, exactly like the reference) -
    mem_bank = state["queue"].shape[0]
    assert mem_bank % bsz == 0
    ptr = state["queue_ptr"][0]
    queue = lax.dynamic_update_slice(state["queue"], current_target, (ptr, 0))
    queue_t = lax.dynamic_update_slice(
        state["queue_t"], jnp.transpose(current_target).astype(jnp.bfloat16), (0, ptr))
    labels_buf = lax.dynamic_update_slice(state["labels"], col0, (ptr,))
    gt_buf = lax.dynamic_update_slice(state["gt_labels"],
                                      gt_labels.astype(jnp.int32), (ptr,))
    new_state = dict(state)
    new_state.update(encoder_t=enc_t, queue=queue, queue_t=queue_t,
                     labels=labels_buf, gt_labels=gt_buf,
                     queue_ptr=(state["queue_ptr"] + bsz) % mem_bank)

    # ---- CMSF loss hot path (streaming Pallas kernel + tiny JAX merge) --------
    Lx = pseudo_labels_topk[:, :topk_lbl]
    L, purity, purity_msf = cmsf_loss(
        query, current_target, queue, queue_t, Lx, labels_buf,
        gt_labels.astype(jnp.int32), gt_buf,
        topk=topk, topk_lbl=topk_lbl, tile_m=bank_tile, with_msf=compute_purity_msf)

    # ---- accuracy statistics (use_conf == False path) --------------------------
    unsup_f = unsup_mask.astype(jnp.float32)
    n_unsup = jnp.sum(unsup_f)
    eq0 = (gt_labels == pseudo_labels_topk[:, 0]).astype(jnp.float32)
    acc = 100.0 * jnp.sum(eq0 * unsup_f) / n_unsup
    eq_topk = (pseudo_labels_topk == gt_labels[:, None]).astype(jnp.float32)
    acc_topk = 100.0 * jnp.sum(jnp.sum(eq_topk, axis=1) * unsup_f) / n_unsup

    return (L, purity, purity_msf, acc, acc_topk, prob_topk), new_state


# ---------------------------------------------------------------------------
if __name__ == "__main__":
    key = jax.random.PRNGKey(0)
    k_params, k_imq, k_imt, k_gt, k_shuf = jax.random.split(key, 5)

    # Small, module-consistent shapes.
    B, C, H, W = 8, 4, 16, 16          # im_q / im_t : (B, C, H, W)  NCHW
    FEAT_DIM = 64                      # -> hidden 128, proj_dim 16
    MEM_BANK = 512                     # mem_bank_size % batch == 0
    NCLS = 16
    TOPK, TOPK_LBL = 5, 1
    BANK_TILE = 128                    # 4 streamed bank tiles -> exercises grid + merge

    state = init_pseudo_cmsf(k_params, in_ch=C, feat_dim=FEAT_DIM,
                             mem_bank_size=MEM_BANK, ncls=NCLS)

    im_q = jax.random.normal(k_imq, (B, C, H, W), jnp.float32)
    im_t = jax.random.normal(k_imt, (B, C, H, W), jnp.float32)
    gt_labels = jax.random.randint(k_gt, (B,), 0, NCLS, dtype=jnp.int32)
    is_unsup = jnp.array([0, 0, 0, 0, 1, 1, 1, 1], dtype=jnp.int32)

    outs, new_state = pseudo_cmsf_forward(
        state, im_q, im_t, gt_labels, is_unsup, k_shuf,
        m=0.99, topk=TOPK, topk_lbl=TOPK_LBL, bank_tile=BANK_TILE,
        compute_purity_msf=True)
    outs = jax.block_until_ready(outs)
    jax.block_until_ready(new_state)

    L, purity, purity_msf, acc, acc_topk, prob_topk = outs
    assert L.shape == () and purity.shape == () and purity_msf.shape == ()
    assert acc.shape == () and acc_topk.shape == ()
    assert prob_topk.shape == (B, 5)
    assert all(bool(jnp.isfinite(x)) for x in (L, purity, purity_msf, acc, acc_topk))
    assert 0.0 <= float(purity) <= 100.0 and 0.0 <= float(purity_msf) <= 100.0
    assert int(new_state["queue_ptr"][0]) == B
    assert new_state["queue_t"].shape == (FEAT_DIM // 4, MEM_BANK)

    print("KERNEL_OK")
</pallas_src>

<mosaic_0001>
module attributes {stable_mosaic.version = 11 : i64} {
  func.func @_mlp_chain_kernel(%arg0: i32, %arg1: memref<8x4xbf16, #tpu.memory_space<vmem>>, %arg2: memref<4x64xbf16, #tpu.memory_space<vmem>>, %arg3: memref<1x64xf32, #tpu.memory_space<vmem>>, %arg4: memref<64x128xbf16, #tpu.memory_space<vmem>>, %arg5: memref<1x128xf32, #tpu.memory_space<vmem>>, %arg6: memref<128x16xbf16, #tpu.memory_space<vmem>>, %arg7: memref<1x16xf32, #tpu.memory_space<vmem>>, %arg8: memref<16x128xbf16, #tpu.memory_space<vmem>>, %arg9: memref<1x128xf32, #tpu.memory_space<vmem>>, %arg10: memref<128x16xbf16, #tpu.memory_space<vmem>>, %arg11: memref<1x16xf32, #tpu.memory_space<vmem>>, %arg12: memref<8x16xf32, #tpu.memory_space<vmem>>) attributes {dimension_semantics = [#tpu.dimension_semantics<arbitrary>], iteration_bounds = array<i64: 1>, scalar_prefetch = 0 : i64, scratch_operands = 0 : i64, tpu.core_type = #tpu.core_type<tc>, window_params = [{pipeline_mode = #tpu.pipeline_mode<synchronous>, transform_indices = @transform_0, window_bounds = array<i64: 8, 4>}, {pipeline_mode = #tpu.pipeline_mode<synchronous>, transform_indices = @transform_1, window_bounds = array<i64: 4, 64>}, {pipeline_mode = #tpu.pipeline_mode<synchronous>, transform_indices = @transform_2, window_bounds = array<i64: 1, 64>}, {pipeline_mode = #tpu.pipeline_mode<synchronous>, transform_indices = @transform_3, window_bounds = array<i64: 64, 128>}, {pipeline_mode = #tpu.pipeline_mode<synchronous>, transform_indices = @transform_4, window_bounds = array<i64: 1, 128>}, {pipeline_mode = #tpu.pipeline_mode<synchronous>, transform_indices = @transform_5, window_bounds = array<i64: 128, 16>}, {pipeline_mode = #tpu.pipeline_mode<synchronous>, transform_indices = @transform_6, window_bounds = array<i64: 1, 16>}, {pipeline_mode = #tpu.pipeline_mode<synchronous>, transform_indices = @transform_7, window_bounds = array<i64: 16, 128>}, {pipeline_mode = #tpu.pipeline_mode<synchronous>, transform_indices = @transform_8, window_bounds = array<i64: 1, 128>}, {pipeline_mode = #tpu.pipeline_mode<synchronous>, transform_indices = @transform_9, window_bounds = array<i64: 128, 16>}, {pipeline_mode = #tpu.pipeline_mode<synchronous>, transform_indices = @transform_10, window_bounds = array<i64: 1, 16>}, {pipeline_mode = #tpu.pipeline_mode<synchronous>, transform_indices = @transform_11, window_bounds = array<i64: 8, 16>}]} {
    %c0 = arith.constant 0 : index
    %c0_0 = arith.constant 0 : index
    %0 = vector.load %arg1[%c0, %c0_0] : memref<8x4xbf16, #tpu.memory_space<vmem>>, vector<8x4xbf16>
    %c0_1 = arith.constant 0 : index
    %c0_2 = arith.constant 0 : index
    %1 = vector.load %arg2[%c0_1, %c0_2] : memref<4x64xbf16, #tpu.memory_space<vmem>>, vector<4x64xbf16>
    %c0_3 = arith.constant 0 : index
    %c0_4 = arith.constant 0 : index
    %2 = vector.load %arg3[%c0_3, %c0_4] : memref<1x64xf32, #tpu.memory_space<vmem>>, vector<1x64xf32>
    %cst = arith.constant dense<0.000000e+00> : vector<8x64xf32>
    %3 = tpu.matmul %0, %1, %cst {dimension_numbers = #tpu.dot_dimension_numbers<[1], [0], [0], [1], [0, 0, 1, 1], [], []>} : vector<8x4xbf16>, vector<4x64xbf16>, vector<8x64xf32> -> vector<8x64xf32>
    %4 = vector.broadcast %2 : vector<1x64xf32> to vector<8x64xf32>
    %5 = arith.addf %3, %4 : vector<8x64xf32>
    %cst_5 = arith.constant 0.000000e+00 : f32
    %6 = vector.broadcast %cst_5 : f32 to vector<8x64xf32>
    %7 = arith.maximumf %5, %6 : vector<8x64xf32>
    %8 = arith.truncf %7 : vector<8x64xf32> to vector<8x64xbf16>
    %c0_6 = arith.constant 0 : index
    %c0_7 = arith.constant 0 : index
    %9 = vector.load %arg4[%c0_6, %c0_7] : memref<64x128xbf16, #tpu.memory_space<vmem>>, vector<64x128xbf16>
    %c0_8 = arith.constant 0 : index
    %c0_9 = arith.constant 0 : index
    %10 = vector.load %arg5[%c0_8, %c0_9] : memref<1x128xf32, #tpu.memory_space<vmem>>, vector<1x128xf32>
    %cst_10 = arith.constant dense<0.000000e+00> : vector<8x128xf32>
    %11 = tpu.matmul %8, %9, %cst_10 {dimension_numbers = #tpu.dot_dimension_numbers<[1], [0], [0], [1], [0, 0, 1, 1], [], []>} : vector<8x64xbf16>, vector<64x128xbf16>, vector<8x128xf32> -> vector<8x128xf32>
    %12 = vector.broadcast %10 : vector<1x128xf32> to vector<8x128xf32>
    %13 = arith.addf %11, %12 : vector<8x128xf32>
    %cst_11 = arith.constant 0.000000e+00 : f32
    %14 = vector.broadcast %cst_11 : f32 to vector<8x128xf32>
    %15 = arith.maximumf %13, %14 : vector<8x128xf32>
    %16 = arith.truncf %15 : vector<8x128xf32> to vector<8x128xbf16>
    %c0_12 = arith.constant 0 : index
    %c0_13 = arith.constant 0 : index
    %17 = vector.load %arg6[%c0_12, %c0_13] : memref<128x16xbf16, #tpu.memory_space<vmem>>, vector<128x16xbf16>
    %c0_14 = arith.constant 0 : index
    %c0_15 = arith.constant 0 : index
    %18 = vector.load %arg7[%c0_14, %c0_15] : memref<1x16xf32, #tpu.memory_space<vmem>>, vector<1x16xf32>
    %cst_16 = arith.constant dense<0.000000e+00> : vector<8x16xf32>
    %19 = tpu.matmul %16, %17, %cst_16 {dimension_numbers = #tpu.dot_dimension_numbers<[1], [0], [0], [1], [0, 0, 1, 1], [], []>} : vector<8x128xbf16>, vector<128x16xbf16>, vector<8x16xf32> -> vector<8x16xf32>
    %20 = vector.broadcast %18 : vector<1x16xf32> to vector<8x16xf32>
    %21 = arith.addf %19, %20 : vector<8x16xf32>
    %22 = arith.truncf %21 : vector<8x16xf32> to vector<8x16xbf16>
    %c0_17 = arith.constant 0 : index
    %c0_18 = arith.constant 0 : index
    %23 = vector.load %arg8[%c0_17, %c0_18] : memref<16x128xbf16, #tpu.memory_space<vmem>>, vector<16x128xbf16>
    %c0_19 = arith.constant 0 : index
    %c0_20 = arith.constant 0 : index
    %24 = vector.load %arg9[%c0_19, %c0_20] : memref<1x128xf32, #tpu.memory_space<vmem>>, vector<1x128xf32>
    %cst_21 = arith.constant dense<0.000000e+00> : vector<8x128xf32>
    %25 = tpu.matmul %22, %23, %cst_21 {dimension_numbers = #tpu.dot_dimension_numbers<[1], [0], [0], [1], [0, 0, 1, 1], [], []>} : vector<8x16xbf16>, vector<16x128xbf16>, vector<8x128xf32> -> vector<8x128xf32>
    %26 = vector.broadcast %24 : vector<1x128xf32> to vector<8x128xf32>
    %27 = arith.addf %25, %26 : vector<8x128xf32>
    %cst_22 = arith.constant 0.000000e+00 : f32
    %28 = vector.broadcast %cst_22 : f32 to vector<8x128xf32>
    %29 = arith.maximumf %27, %28 : vector<8x128xf32>
    %30 = arith.truncf %29 : vector<8x128xf32> to vector<8x128xbf16>
    %c0_23 = arith.constant 0 : index
    %c0_24 = arith.constant 0 : index
    %31 = vector.load %arg10[%c0_23, %c0_24] : memref<128x16xbf16, #tpu.memory_space<vmem>>, vector<128x16xbf16>
    %c0_25 = arith.constant 0 : index
    %c0_26 = arith.constant 0 : index
    %32 = vector.load %arg11[%c0_25, %c0_26] : memref<1x16xf32, #tpu.memory_space<vmem>>, vector<1x16xf32>
    %cst_27 = arith.constant dense<0.000000e+00> : vector<8x16xf32>
    %33 = tpu.matmul %30, %31, %cst_27 {dimension_numbers = #tpu.dot_dimension_numbers<[1], [0], [0], [1], [0, 0, 1, 1], [], []>} : vector<8x128xbf16>, vector<128x16xbf16>, vector<8x16xf32> -> vector<8x16xf32>
    %34 = vector.broadcast %32 : vector<1x16xf32> to vector<8x16xf32>
    %35 = arith.addf %33, %34 : vector<8x16xf32>
    %36 = arith.mulf %35, %35 : vector<8x16xf32>
    %cst_28 = arith.constant dense<0.000000e+00> : vector<8xf32>
    %37 = vector.multi_reduction <add>, %36, %cst_28 [1] : vector<8x16xf32> to vector<8xf32>
    %38 = vector.shape_cast %37 : vector<8xf32> to vector<8x1xf32>
    %cst_29 = arith.constant 1.000000e-24 : f32
    %39 = vector.broadcast %cst_29 : f32 to vector<8x1xf32>
    %40 = arith.maximumf %38, %39 : vector<8x1xf32>
    %41 = math.rsqrt %40 : vector<8x1xf32>
    %42 = vector.broadcast %41 : vector<8x1xf32> to vector<8x16xf32>
    %43 = arith.mulf %35, %42 : vector<8x16xf32>
    %c0_30 = arith.constant 0 : index
    %c0_31 = arith.constant 0 : index
    %44 = vector.load %arg12[%c0_30, %c0_31] : memref<8x16xf32, #tpu.memory_space<vmem>>, vector<8x16xf32>
    tpu.vector_store %arg12[%c0_30, %c0_31], %43 {strides = array<i32>} : memref<8x16xf32, #tpu.memory_space<vmem>>, vector<8x16xf32>,
    return
  }
  func.func @transform_0(%arg0: i32) -> (i32, i32) {
    %c0_i32 = arith.constant 0 : i32
    %c0_i32_0 = arith.constant 0 : i32
    %c0_i32_1 = arith.constant 0 : i32
    return %c0_i32, %c0_i32_0 : i32, i32
  }
  func.func @transform_1(%arg0: i32) -> (i32, i32) {
    %c0_i32 = arith.constant 0 : i32
    %c0_i32_0 = arith.constant 0 : i32
    %c0_i32_1 = arith.constant 0 : i32
    return %c0_i32, %c0_i32_0 : i32, i32
  }
  func.func @transform_2(%arg0: i32) -> (i32, i32) {
    %c0_i32 = arith.constant 0 : i32
    %c0_i32_0 = arith.constant 0 : i32
    %c0_i32_1 = arith.constant 0 : i32
    return %c0_i32, %c0_i32_0 : i32, i32
  }
  func.func @transform_3(%arg0: i32) -> (i32, i32) {
    %c0_i32 = arith.constant 0 : i32
    %c0_i32_0 = arith.constant 0 : i32
    %c0_i32_1 = arith.constant 0 : i32
    return %c0_i32, %c0_i32_0 : i32, i32
  }
  func.func @transform_4(%arg0: i32) -> (i32, i32) {
    %c0_i32 = arith.constant 0 : i32
    %c0_i32_0 = arith.constant 0 : i32
    %c0_i32_1 = arith.constant 0 : i32
    return %c0_i32, %c0_i32_0 : i32, i32
  }
  func.func @transform_5(%arg0: i32) -> (i32, i32) {
    %c0_i32 = arith.constant 0 : i32
    %c0_i32_0 = arith.constant 0 : i32
    %c0_i32_1 = arith.constant 0 : i32
    return %c0_i32, %c0_i32_0 : i32, i32
  }
  func.func @transform_6(%arg0: i32) -> (i32, i32) {
    %c0_i32 = arith.constant 0 : i32
    %c0_i32_0 = arith.constant 0 : i32
    %c0_i32_1 = arith.constant 0 : i32
    return %c0_i32, %c0_i32_0 : i32, i32
  }
  func.func @transform_7(%arg0: i32) -> (i32, i32) {
    %c0_i32 = arith.constant 0 : i32
    %c0_i32_0 = arith.constant 0 : i32
    %c0_i32_1 = arith.constant 0 : i32
    return %c0_i32, %c0_i32_0 : i32, i32
  }
  func.func @transform_8(%arg0: i32) -> (i32, i32) {
    %c0_i32 = arith.constant 0 : i32
    %c0_i32_0 = arith.constant 0 : i32
    %c0_i32_1 = arith.constant 0 : i32
    return %c0_i32, %c0_i32_0 : i32, i32
  }
  func.func @transform_9(%arg0: i32) -> (i32, i32) {
    %c0_i32 = arith.constant 0 : i32
    %c0_i32_0 = arith.constant 0 : i32
    %c0_i32_1 = arith.constant 0 : i32
    return %c0_i32, %c0_i32_0 : i32, i32
  }
  func.func @transform_10(%arg0: i32) -> (i32, i32) {
    %c0_i32 = arith.constant 0 : i32
    %c0_i32_0 = arith.constant 0 : i32
    %c0_i32_1 = arith.constant 0 : i32
    return %c0_i32, %c0_i32_0 : i32, i32
  }
  func.func @transform_11(%arg0: i32) -> (i32, i32) {
    %c0_i32 = arith.constant 0 : i32
    %c0_i32_0 = arith.constant 0 : i32
    %c0_i32_1 = arith.constant 0 : i32
    return %c0_i32, %c0_i32_0 : i32, i32
  }
}

</mosaic_0001>

<llo_original>
// kernel: tpu_custom_call.1
$region0: #{tpu_custom_call.1}
  #allocation0 [shape = 'u32[]', space=smem, size = 0x4, offset = 0x4, fixed_abs, tag = 'smem constant byte address 0x4 - core index']
  #allocation1 [shape = 'u32[72,128]{1,0:T(1,128)}', space=vmem, size = 0x9000, scoped, tag = 'internal scratch']
  %s0 = inlined_call_operand.vmem [shape: bf16[8,4], index: 0, kind: input, shape index: {}]
  %s1 = inlined_call_operand.vmem [shape: bf16[4,64], index: 1, kind: input, shape index: {}]
  %s2 = inlined_call_operand.vmem [shape: f32[1,64], index: 2, kind: input, shape index: {}]
  %s3 = inlined_call_operand.vmem [shape: bf16[64,128], index: 3, kind: input, shape index: {}]
  %s4 = inlined_call_operand.vmem [shape: f32[1,128], index: 4, kind: input, shape index: {}]
  %s5 = inlined_call_operand.vmem [shape: bf16[128,16], index: 5, kind: input, shape index: {}]
  %s6 = inlined_call_operand.vmem [shape: f32[1,16], index: 6, kind: input, shape index: {}]
  %s7 = inlined_call_operand.vmem [shape: bf16[16,128], index: 7, kind: input, shape index: {}]
  %s8 = inlined_call_operand.vmem [shape: f32[1,128], index: 8, kind: input, shape index: {}]
  %s9 = inlined_call_operand.vmem [shape: bf16[128,16], index: 9, kind: input, shape index: {}]
  %s10 = inlined_call_operand.vmem [shape: f32[1,16], index: 10, kind: input, shape index: {}]
  %s11 = inlined_call_operand.hbm [shape: f32[8,16], index: 11, kind: output, shape index: {}]
  %s12 = sld [smem:[#allocation0]]
  $region54: #{tpu_custom_call.1} parent=0
    _
  %s14 = ssub.s32 1, %s12
  %s15 = scalar_select 0, %s14, %s12
  $region1: #{tpu_custom_call.1} parent=0
    #allocation2 [shape = 'u8[4096]{0}', space=vmem, size = 0x1000, scoped, tag = 'output window, operand 0, single buffered']
    #allocation3 [shape = 's32[1]{0}', space=sflag, size = 0x4, scoped, tag = 'scoped memory for tpu_custom_call.1']
    %16 = vsyncpa [#allocation3], 0
    // Predicated region
    $region2: #{tpu_custom_call.1} parent=1 // pred_check
      _
    $region3: #{tpu_custom_call.1} parent=1 // pred_check_branch
      %18 = sbr.rel (0) target = $region5
    $region4: #{tpu_custom_call.1} parent=1 // pred_region
      _
    $region5: #{tpu_custom_call.1} parent=1 // pred_fallthru
      _
    // Predicated region
    $region6: #{tpu_custom_call.1} parent=1 // pred_check
      _
    $region7: #{tpu_custom_call.1} parent=1 // pred_check_branch
      %20 = sbr.rel (0) target = $region9
    $region8: #{tpu_custom_call.1} parent=1 // pred_region
      _
    $region9: #{tpu_custom_call.1} parent=1 // pred_fallthru
      _
    // Predicated region
    $region10: #{tpu_custom_call.1} parent=1 // pred_check
      _
    $region11: #{tpu_custom_call.1} parent=1 // pred_check_branch
      %22 = sbr.rel (0) target = $region13
    $region12: #{tpu_custom_call.1} parent=1 // pred_region
      _
    $region13: #{tpu_custom_call.1} parent=1 // pred_fallthru
      _
    // Predicated region
    $region14: #{tpu_custom_call.1} parent=1 // pred_check
      _
    $region15: #{tpu_custom_call.1} parent=1 // pred_check_branch
      %24 = sbr.rel (0) target = $region17
    $region16: #{tpu_custom_call.1} parent=1 // pred_region
      _
    $region17: #{tpu_custom_call.1} parent=1 // pred_fallthru
      _
    // Predicated region
    $region18: #{tpu_custom_call.1} parent=1 // pred_check
      _
    $region19: #{tpu_custom_call.1} parent=1 // pred_check_branch
      %26 = sbr.rel (0) target = $region21
    $region20: #{tpu_custom_call.1} parent=1 // pred_region
      _
    $region21: #{tpu_custom_call.1} parent=1 // pred_fallthru
      _
    // Predicated region
    $region22: #{tpu_custom_call.1} parent=1 // pred_check
      _
    $region23: #{tpu_custom_call.1} parent=1 // pred_check_branch
      %28 = sbr.rel (0) target = $region25
    $region24: #{tpu_custom_call.1} parent=1 // pred_region
      _
    $region25: #{tpu_custom_call.1} parent=1 // pred_fallthru
      _
    // Predicated region
    $region26: #{tpu_custom_call.1} parent=1 // pred_check
      _
    $region27: #{tpu_custom_call.1} parent=1 // pred_check_branch
      %30 = sbr.rel (0) target = $region29
    $region28: #{tpu_custom_call.1} parent=1 // pred_region
      _
    $region29: #{tpu_custom_call.1} parent=1 // pred_fallthru
      _
    // Predicated region
    $region30: #{tpu_custom_call.1} parent=1 // pred_check
      _
    $region31: #{tpu_custom_call.1} parent=1 // pred_check_branch
      %32 = sbr.rel (0) target = $region33
    $region32: #{tpu_custom_call.1} parent=1 // pred_region
      _
    $region33: #{tpu_custom_call.1} parent=1 // pred_fallthru
      _
    // Predicated region
    $region34: #{tpu_custom_call.1} parent=1 // pred_check
      _
    $region35: #{tpu_custom_call.1} parent=1 // pred_check_branch
      %34 = sbr.rel (0) target = $region37
    $region36: #{tpu_custom_call.1} parent=1 // pred_region
      _
    $region37: #{tpu_custom_call.1} parent=1 // pred_fallthru
      _
    // Predicated region
    $region38: #{tpu_custom_call.1} parent=1 // pred_check
      _
    $region39: #{tpu_custom_call.1} parent=1 // pred_check_branch
      %36 = sbr.rel (0) target = $region41
    $region40: #{tpu_custom_call.1} parent=1 // pred_region
      _
    $region41: #{tpu_custom_call.1} parent=1 // pred_fallthru
      _
    // Predicated region
    $region42: #{tpu_custom_call.1} parent=1 // pred_check
      _
    $region43: #{tpu_custom_call.1} parent=1 // pred_check_branch
      %38 = sbr.rel (0) target = $region45
    $region44: #{tpu_custom_call.1} parent=1 // pred_region
      _
    $region45: #{tpu_custom_call.1} parent=1 // pred_fallthru
      _
    %v40 = vld [vmem:[%s0] sm:$0xf]
    %v41 = vld [vmem:[%s1] sm:$0x3]
    %v42 = vld [vmem:[%s2] sm:$0x1]
    %v44 = vperm.slane %v42, 0
    %vm46 = vcmask 31744
    %v48 = vsel %vm46, %v40, 0
    %vm50 = vcmask 1041408
    %v52 = vsel %vm50, %v41, 0
    %54 = vmatpush.bf16.msra.mxu0 0
    %55 = vmatpush.bf16.msra.mxu0 0
    %56 = vmatpush.bf16.msra.mxu0 0
    %57 = vmatpush.bf16.msra.mxu0 0
    %58 = vmatpush.bf16.msra.mxu0 0
    %59 = vmatpush.bf16.msra.mxu0 0
    %60 = vmatpush.bf16.msra.mxu0 0
    %61 = vmatpush.bf16.msra.mxu0 %v52
    %62 = vmatmul.bf16.gmra.mxu0 %v48
    %v63 = vpop.f32.mrf.mxu0
    %v64 = vadd.f32 %v44, %v63
    %v65 = vpop.f32.mrf.mxu0
    %66 = vdwg.mxu0
    %v67 = vmax.f32 %v64, 0.0
    %v68 = vpack.c.bf16 %v67, %v67
    %v69 = vld [vmem:[%s3] sm:$0xf]
    %v70 = vld [vmem:[%s3 + $0x4] sm:$0xf]
    %v71 = vld [vmem:[%s3 + $0x8] sm:$0xf]
    %v72 = vld [vmem:[%s3 + $0xc] sm:$0xf]
    %v73 = vld [vmem:[%s3 + $0x10] sm:$0xf]
    %v74 = vld [vmem:[%s3 + $0x14] sm:$0xf]
    %v75 = vld [vmem:[%s3 + $0x18] sm:$0xf]
    %v76 = vld [vmem:[%s3 + $0x1c] sm:$0xf]
    %v77 = vld [vmem:[%s4] sm:$0x1]
    %v79 = vperm.slane %v77, 0
    %v89 = vunpack.c.l.b16 %v69
    %v90 = vunpack.c.l.b16 %v70
    %v91 = vunpack.c.l.b16 %v71
    %v92 = vunpack.c.l.b16 %v72
    %v93 = vunpack.c.l.b16 %v73
    %v94 = vunpack.c.l.b16 %v74
    %v95 = vunpack.c.l.b16 %v75
    %v96 = vunpack.c.l.b16 %v76
    %v97 = vpack.c.b16 %v90, %v89
    %v98 = vpack.c.b16 %v92, %v91
    %v99 = vpack.c.b16 %v94, %v93
    %v100 = vpack.c.b16 %v96, %v95
    %vm105 = vcmask 523264
    %v107 = vsel %vm105, %v68, 0
    %109 = vmatpush.bf16.msra.mxu0 0
    %110 = vmatpush.bf16.msra.mxu0 0
    %111 = vmatpush.bf16.msra.mxu0 0
    %112 = vmatpush.bf16.msra.mxu0 0
    %113 = vmatpush.bf16.msra.mxu0 %v100
    %114 = vmatpush.bf16.msra.mxu0 %v99
    %115 = vmatpush.bf16.msra.mxu0 %v98
    %116 = vmatpush.bf16.msra.mxu0 %v97
    %117 = vmatmul.bf16.gmra.mxu0 %v107
    %v118 = vpop.f32.mrf.mxu0
    %v119 = vadd.f32 %v79, %v118
    %v120 = vpop.f32.mrf.mxu0
    %121 = vdwg.mxu0
    %v122 = vmax.f32 %v119, 0.0
    %v123 = vpack.c.bf16 %v122, %v122
    %v124 = vld [vmem:[%s5] sm:$0xf]
    %v125 = vld [vmem:[%s5 + $0x4] sm:$0xf]
    %v126 = vld [vmem:[%s5 + $0x8] sm:$0xf]
    %v127 = vld [vmem:[%s5 + $0xc] sm:$0xf]
    %v128 = vld [vmem:[%s5 + $0x10] sm:$0xf]
    %v129 = vld [vmem:[%s5 + $0x14] sm:$0xf]
    %v130 = vld [vmem:[%s5 + $0x18] sm:$0xf]
    %v131 = vld [vmem:[%s5 + $0x1c] sm:$0xf]
    %v132 = vld [vmem:[%s5 + $0x20] sm:$0xf]
    %v133 = vld [vmem:[%s5 + $0x24] sm:$0xf]
    %v134 = vld [vmem:[%s5 + $0x28] sm:$0xf]
    %v135 = vld [vmem:[%s5 + $0x2c] sm:$0xf]
    %v136 = vld [vmem:[%s5 + $0x30] sm:$0xf]
    %v137 = vld [vmem:[%s5 + $0x34] sm:$0xf]
    %v138 = vld [vmem:[%s5 + $0x38] sm:$0xf]
    %v139 = vld [vmem:[%s5 + $0x3c] sm:$0xf]
    %v140 = vld [vmem:[%s6] sm:$0x1]
    %v142 = vperm.slane %v140, 0
    %v160 = vunpack.c.l.b16 %v124
    %v161 = vunpack.c.l.b16 %v125
    %v162 = vunpack.c.l.b16 %v126
    %v163 = vunpack.c.l.b16 %v127
    %v164 = vunpack.c.l.b16 %v128
    %v165 = vunpack.c.l.b16 %v129
    %v166 = vunpack.c.l.b16 %v130
    %v167 = vunpack.c.l.b16 %v131
    %v168 = vunpack.c.l.b16 %v132
    %v169 = vunpack.c.l.b16 %v133
    %v170 = vunpack.c.l.b16 %v134
    %v171 = vunpack.c.l.b16 %v135
    %v172 = vunpack.c.l.b16 %v136
    %v173 = vunpack.c.l.b16 %v137
    %v174 = vunpack.c.l.b16 %v138
    %v175 = vunpack.c.l.b16 %v139
    %v176 = vpack.c.b16 %v161, %v160
    %v177 = vpack.c.b16 %v163, %v162
    %v178 = vpack.c.b16 %v165, %v164
    %v179 = vpack.c.b16 %v167, %v166
    %v180 = vpack.c.b16 %v169, %v168
    %v181 = vpack.c.b16 %v171, %v170
    %v182 = vpack.c.b16 %v173, %v172
    %v183 = vpack.c.b16 %v175, %v174
    %192 = vmatpush.bf16.msra.mxu0 %v183
    %193 = vmatpush.bf16.msra.mxu0 %v182
    %194 = vmatpush.bf16.msra.mxu0 %v181
    %195 = vmatpush.bf16.msra.mxu0 %v180
    %196 = vmatpush.bf16.msra.mxu0 %v179
    %197 = vmatpush.bf16.msra.mxu0 %v178
    %198 = vmatpush.bf16.msra.mxu0 %v177
    %199 = vmatpush.bf16.msra.mxu0 %v176
    %200 = vmatmul.bf16.gmra.mxu0 %v123
    %v201 = vpop.f32.mrf.mxu0
    %v202 = vadd.f32 %v142, %v201
    %v203 = vpop.f32.mrf.mxu0
    %204 = vdwg.mxu0
    %v205 = vpack.c.bf16 %v202, %v202
    %v206 = vld [vmem:[%s7] sm:$0xf]
    %v207 = vld [vmem:[%s7 + $0x4] sm:$0xf]
    %v208 = vld [vmem:[%s8] sm:$0x1]
    %v210 = vperm.slane %v208, 0
    %v214 = vunpack.c.l.b16 %v206
    %v215 = vunpack.c.l.b16 %v207
    %v216 = vpack.c.b16 %v215, %v214
    %vm218 = vcmask 130048
    %v220 = vsel %vm218, %v205, 0
    %222 = vmatpush.bf16.msra.mxu0 0
    %223 = vmatpush.bf16.msra.mxu0 0
    %224 = vmatpush.bf16.msra.mxu0 0
    %225 = vmatpush.bf16.msra.mxu0 0
    %226 = vmatpush.bf16.msra.mxu0 0
    %227 = vmatpush.bf16.msra.mxu0 0
    %228 = vmatpush.bf16.msra.mxu0 0
    %229 = vmatpush.bf16.msra.mxu0 %v216
    %230 = vmatmul.bf16.gmra.mxu0 %v220
    %v231 = vpop.f32.mrf.mxu0
    %v232 = vadd.f32 %v210, %v231
    %v233 = vpop.f32.mrf.mxu0
    %234 = vdwg.mxu0
    %v235 = vmax.f32 %v232, 0.0
    %v236 = vpack.c.bf16 %v235, %v235
    %v237 = vld [vmem:[%s9] sm:$0xf]
    %v238 = vld [vmem:[%s9 + $0x4] sm:$0xf]
    %v239 = vld [vmem:[%s9 + $0x8] sm:$0xf]
    %v240 = vld [vmem:[%s9 + $0xc] sm:$0xf]
    %v241 = vld [vmem:[%s9 + $0x10] sm:$0xf]
    %v242 = vld [vmem:[%s9 + $0x14] sm:$0xf]
    %v243 = vld [vmem:[%s9 + $0x18] sm:$0xf]
    %v244 = vld [vmem:[%s9 + $0x1c] sm:$0xf]
    %v245 = vld [vmem:[%s9 + $0x20] sm:$0xf]
    %v246 = vld [vmem:[%s9 + $0x24] sm:$0xf]
    %v247 = vld [vmem:[%s9 + $0x28] sm:$0xf]
    %v248 = vld [vmem:[%s9 + $0x2c] sm:$0xf]
    %v249 = vld [vmem:[%s9 + $0x30] sm:$0xf]
    %v250 = vld [vmem:[%s9 + $0x34] sm:$0xf]
    %v251 = vld [vmem:[%s9 + $0x38] sm:$0xf]
    %v252 = vld [vmem:[%s9 + $0x3c] sm:$0xf]
    %v253 = vld [vmem:[%s10] sm:$0x1]
    %v255 = vperm.slane %v253, 0
    %v273 = vunpack.c.l.b16 %v237
    %v274 = vunpack.c.l.b16 %v238
    %v275 = vunpack.c.l.b16 %v239
    %v276 = vunpack.c.l.b16 %v240
    %v277 = vunpack.c.l.b16 %v241
    %v278 = vunpack.c.l.b16 %v242
    %v279 = vunpack.c.l.b16 %v243
    %v280 = vunpack.c.l.b16 %v244
    %v281 = vunpack.c.l.b16 %v245
    %v282 = vunpack.c.l.b16 %v246
    %v283 = vunpack.c.l.b16 %v247
    %v284 = vunpack.c.l.b16 %v248
    %v285 = vunpack.c.l.b16 %v249
    %v286 = vunpack.c.l.b16 %v250
    %v287 = vunpack.c.l.b16 %v251
    %v288 = vunpack.c.l.b16 %v252
    %v289 = vpack.c.b16 %v274, %v273
    %v290 = vpack.c.b16 %v276, %v275
    %v291 = vpack.c.b16 %v278, %v277
    %v292 = vpack.c.b16 %v280, %v279
    %v293 = vpack.c.b16 %v282, %v281
    %v294 = vpack.c.b16 %v284, %v283
    %v295 = vpack.c.b16 %v286, %v285
    %v296 = vpack.c.b16 %v288, %v287
    %305 = vmatpush.bf16.msra.mxu0 %v296
    %306 = vmatpush.bf16.msra.mxu0 %v295
    %307 = vmatpush.bf16.msra.mxu0 %v294
    %308 = vmatpush.bf16.msra.mxu0 %v293
    %309 = vmatpush.bf16.msra.mxu0 %v292
    %310 = vmatpush.bf16.msra.mxu0 %v291
    %311 = vmatpush.bf16.msra.mxu0 %v290
    %312 = vmatpush.bf16.msra.mxu0 %v289
    %313 = vmatmul.bf16.gmra.mxu0 %v236
    %v314 = vpop.f32.mrf.mxu0
    %v315 = vadd.f32 %v255, %v314
    %v316 = vpop.f32.mrf.mxu0
    %317 = vdwg.mxu0
    %v318 = vmul.f32 %v315, %v315
    %v319 = vsel %vm218, %v318, 0.0
    %320 = vadd.xlane.f32.xlu0 %v319
    %v321 = vpop.xlane.xlu0 %320
    %v322 = vmax.f32 %v321, 1e-24
    %v323 = vrsqrt.pop %v322
    %v324 = vmul.f32 %v323, %v322
    %v325 = vmul.f32 %v324, %v323
    %v326 = vmul.f32 0.5, %v325
    %v327 = vsub.f32 1.5, %v326
    %v328 = vmul.f32 %v323, %v327
    %vm329 = vweird.f32 %v322
    %vm330 = vweird.f32 %v323
    %vm331 = vmor %vm329, %vm330
    %v332 = vsel %vm331, %v323, %v328
    %v333 = vmul.f32 %v315, %v332
    %334 = vst.msk [vmem:[#allocation2] sm:$0xff] %vm218, %v333
    // Predicated region
    $region46: #{tpu_custom_call.1} parent=1 // pred_check
      _
    $region47: #{tpu_custom_call.1} parent=1 // pred_check_branch
      %336 = sbr.rel (0) target = $region49
    $region48: #{tpu_custom_call.1} parent=1 // pred_region
      %338 = vsyncadd [#allocation3], 0
      %s340 = sshll.u32 [#allocation2], 4
      %s341 = int_to_ptr.vmem [resolvable:$true] %s340
      %s342 = sshll.u32 %s11, 4
      %s343 = int_to_ptr.hbm [resolvable:$true] %s342
      %345 = dma.vmem_to_hbm [thread:$0]  %s341, 128, %s343, [#allocation3]
    $region49: #{tpu_custom_call.1} parent=1 // pred_fallthru
      _
    // Predicated region
    $region50: #{tpu_custom_call.1} parent=1 // pred_check
      _
    $region51: #{tpu_custom_call.1} parent=1 // pred_check_branch
      %347 = sbr.rel (0) target = $region53
    $region52: #{tpu_custom_call.1} parent=1 // pred_region
      %349 = dma.done [#allocation3], 128
    $region53: #{tpu_custom_call.1} parent=1 // pred_fallthru
      _
    %350 = vsyncpa [#allocation3], 1

</llo_original>
